<compile_context>
chip_gen: v6e
topology: v6e:2x2x1
jax: 0.10.0
libtpu: 0.0.40
codegen_flags: <defaults>
</compile_context>

<pallas_src>
import jax
import jax.numpy as jnp
from jax.experimental import pallas as pl
from jax.experimental.pallas import tpu as pltpu


def _cdiv(a, b):
    return -(-a // b)


def _round_up(x, m):
    return ((x + m - 1) // m) * m


def _embed_span_kernel(ids_ref, emb_ref, tok_out_ref, span_out_ref, acc_ref):
    """One grid step = one TOK-sized block of tokens on one core-split."""
    b = pl.program_id(1)                   # inner ("arbitrary") token-block axis

    @pl.when(b == 0)
    def _():
        acc_ref[...] = jnp.zeros_like(acc_ref)

    ids = ids_ref[...]                     # (TOK, 1) int32; padded slots hold -1
    table = emb_ref[...]                   # (V, D), VMEM-resident across the grid
    tok = ids.shape[0]
    vocab = table.shape[0]

    # One-hot gather on the MXU: onehot[t, v] = (ids[t] == v).
    # id == -1 (padding) -> all-zero row -> zero output row, zero span term.
    col = jax.lax.broadcasted_iota(jnp.int32, (tok, vocab), 1)
    onehot = (col == ids).astype(table.dtype)                              # (TOK, V)
    block = jnp.dot(onehot, table, preferred_element_type=jnp.float32)     # (TOK, D)

    # Dense per-token writeback (full sublane/lane stores).
    tok_out_ref[...] = block.astype(tok_out_ref.dtype)

    # Span 'avg': one block-level reduction per step, accumulated in f32.
    acc_ref[...] += jnp.sum(block, axis=0, keepdims=True)

    # P3 finalize: write this core-split's partial *sum* once, on its last block.
    @pl.when(b == pl.num_programs(1) - 1)
    def _():
        span_out_ref[0] = acc_ref[...]


def static_embedder_forward(idx, emb_table, *, tok_block=1024,
                            min_pallas_tokens=1024, num_core_splits=2):
    """idx: int (B, L); emb_table: float32 (V, D).

    Returns:
      span    : (1, D)      — span_reps_static(emb(idx).view(-1, D), 'avg'),
                              i.e. the StaticEmbedder forward output.
      tok_emb : (n_pad, D)  — the flattened lookup, zero-row-padded to the
                              kernel's block multiple (n_pad >= B*L, bounded
                              slack); slice [:B*L] in the consumer if needed.
    """
    V, D = emb_table.shape
    idx_flat = idx.reshape(-1).astype(jnp.int32)
    N = idx_flat.shape[0]

    # Clamp to valid rows (nn.Embedding errors on out-of-range ids; the
    # in-kernel one-hot path has no runtime bounds check).
    idx_flat = jnp.clip(idx_flat, 0, V - 1)

    # Small-N fast path: pallas_call launch + DMA setup would exceed the work.
    if N < min_pallas_tokens:
        tok_emb = emb_table[idx_flat]
        span = tok_emb.mean(axis=0, keepdims=True).astype(emb_table.dtype)
        return span, tok_emb

    # --- Token tiling with bounded padding waste ------------------------------
    nblocks = _cdiv(N, tok_block)
    num_splits = num_core_splits if nblocks >= num_core_splits else 1
    nblocks = _round_up(nblocks, num_splits)
    tok = _round_up(_cdiv(N, nblocks), 8)        # smallest 8-aligned covering block
    n_pad = nblocks * tok                        # slack < ~9 rows per block
    blocks_per_split = nblocks // num_splits

    # Pad with -1 sentinel: zero one-hot row -> zero output / zero span term.
    ids = jnp.full((n_pad, 1), -1, dtype=jnp.int32).at[:N, 0].set(idx_flat)

    # NOTE: the (tok, 1) int32 ids block lane-pads in VMEM (~tok*512 B/buffer);
    # acceptable at these sizes — switch to a lane-dense (1, tok) layout only if
    # VMEM gets tight (see review).

    tok_emb_pad, span_partials = pl.pallas_call(
        _embed_span_kernel,
        grid=(num_splits, blocks_per_split),
        in_specs=[
            # Token ids, sublane-dense (TOK, 1) block per step.
            pl.BlockSpec((tok, 1), lambda c, b: (c * blocks_per_split + b, 0)),
            # Embedding table: constant block index -> DMA'd once, VMEM-resident.
            pl.BlockSpec((V, D), lambda c, b: (0, 0)),
        ],
        out_specs=[
            # Dense per-token rows.
            pl.BlockSpec((tok, D), lambda c, b: (c * blocks_per_split + b, 0)),
            # Per-core-split partial span sums.
            pl.BlockSpec((1, 1, D), lambda c, b: (c, 0, 0)),
        ],
        out_shape=(
            jax.ShapeDtypeStruct((n_pad, D), emb_table.dtype),
            jax.ShapeDtypeStruct((num_splits, 1, D), jnp.float32),
        ),
        scratch_shapes=[pltpu.VMEM((1, D), jnp.float32)],
        compiler_params=pltpu.CompilerParams(
            # Core splits run in parallel (uses both TCs on v7x); the token
            # reduction axis stays serial per core.
            dimension_semantics=("parallel", "arbitrary"),
            vmem_limit_bytes=32 * 1024 * 1024,
        ),
    )(ids, emb_table)

    span = (span_partials.sum(axis=0) * (1.0 / float(N))).astype(emb_table.dtype)
    return span, tok_emb_pad


if __name__ == "__main__":
    key = jax.random.PRNGKey(0)
    k_emb, k_idx1, k_idx2 = jax.random.split(key, 3)

    V, D = 32, 128          # vocab size, embedding dim (D lane-aligned)

    emb_table = jax.random.normal(k_emb, (V, D), dtype=jnp.float32)

    # --- Test 1: tiny demo shape, Pallas path forced (single block/split) -----
    B, L = 2, 8
    idx = jax.random.randint(k_idx1, (B, L), 0, V, dtype=jnp.int32)
    span, tok_emb_pad = static_embedder_forward(idx, emb_table, min_pallas_tokens=0)
    span = jax.block_until_ready(span)
    tok_emb_pad = jax.block_until_ready(tok_emb_pad)

    N = B * L
    ref_tok = emb_table[idx.reshape(-1)]
    ref_span = ref_tok.mean(axis=0, keepdims=True)
    assert span.shape == (1, D)
    assert tok_emb_pad.shape[0] >= N and tok_emb_pad.shape[1] == D
    assert jnp.allclose(tok_emb_pad[:N], ref_tok, atol=1e-6, rtol=1e-6)
    assert jnp.allclose(span, ref_span, atol=1e-5, rtol=1e-5)

    # --- Test 2: multi-block, dual core-split path (N = 2400 -> 4 x 600) ------
    B2, L2 = 4, 600
    idx2 = jax.random.randint(k_idx2, (B2, L2), 0, V, dtype=jnp.int32)
    span2, tok_emb_pad2 = static_embedder_forward(idx2, emb_table)
    span2 = jax.block_until_ready(span2)
    tok_emb_pad2 = jax.block_until_ready(tok_emb_pad2)

    N2 = B2 * L2
    ref_tok2 = emb_table[idx2.reshape(-1)]
    ref_span2 = ref_tok2.mean(axis=0, keepdims=True)
    assert jnp.allclose(tok_emb_pad2[:N2], ref_tok2, atol=1e-6, rtol=1e-6)
    assert jnp.allclose(span2, ref_span2, atol=1e-4, rtol=1e-4)

    # --- Test 3: small-N fast path (plain-JAX dispatch below threshold) -------
    span3, _ = static_embedder_forward(idx, emb_table)        # N=16 < 1024
    span3 = jax.block_until_ready(span3)
    assert jnp.allclose(span3, ref_span, atol=1e-5, rtol=1e-5)

    print("KERNEL_OK")
</pallas_src>

<mosaic_0001>
module attributes {stable_mosaic.version = 11 : i64} {
  func.func @_embed_span_kernel(%arg0: i32, %arg1: i32, %arg2: memref<16x1xi32, #tpu.memory_space<vmem>>, %arg3: memref<32x128xf32, #tpu.memory_space<vmem>>, %arg4: memref<16x128xf32, #tpu.memory_space<vmem>>, %arg5: memref<1x1x128xf32, #tpu.memory_space<vmem>>, %arg6: memref<1x128xf32, #tpu.memory_space<vmem>>) attributes {dimension_semantics = [#tpu.dimension_semantics<parallel>, #tpu.dimension_semantics<arbitrary>], iteration_bounds = array<i64: 1, 1>, scalar_prefetch = 0 : i64, scratch_operands = 1 : i64, tpu.core_type = #tpu.core_type<tc>, window_params = [{transform_indices = @transform_0, window_bounds = array<i64: 16, 1>}, {pipeline_mode = #tpu.pipeline_mode<synchronous>, transform_indices = @transform_1, window_bounds = array<i64: 32, 128>}, {transform_indices = @transform_2, window_bounds = array<i64: 16, 128>}, {transform_indices = @transform_3, window_bounds = array<i64: 1, 1, 128>}]} {
    %c0_i32 = arith.constant 0 : i32
    %0 = arith.cmpi eq, %arg1, %c0_i32 : i32
    %1 = arith.extui %0 : i1 to i32
    %c0_i32_0 = arith.constant 0 : i32
    %2 = arith.cmpi ne, %1, %c0_i32_0 : i32
    scf.if %2 {
      %cst_13 = arith.constant 0.000000e+00 : f32
      %20 = vector.broadcast %cst_13 : f32 to vector<1x128xf32>
      %c0_14 = arith.constant 0 : index
      %c0_15 = arith.constant 0 : index
      %21 = vector.load %arg6[%c0_14, %c0_15] : memref<1x128xf32, #tpu.memory_space<vmem>>, vector<1x128xf32>
      tpu.vector_store %arg6[%c0_14, %c0_15], %20 {strides = array<i32>} : memref<1x128xf32, #tpu.memory_space<vmem>>, vector<1x128xf32>,
    } else {
    }
    %c0 = arith.constant 0 : index
    %c0_1 = arith.constant 0 : index
    %3 = vector.load %arg2[%c0, %c0_1] : memref<16x1xi32, #tpu.memory_space<vmem>>, vector<16x1xi32>
    %c0_2 = arith.constant 0 : index
    %c0_3 = arith.constant 0 : index
    %4 = vector.load %arg3[%c0_2, %c0_3] : memref<32x128xf32, #tpu.memory_space<vmem>>, vector<32x128xf32>
    %5 = tpu.iota {dimensions = array<i32: 1>} : vector<16x32xi32>
    %6 = vector.broadcast %3 : vector<16x1xi32> to vector<16x32xi32>
    %7 = arith.cmpi eq, %5, %6 : vector<16x32xi32>
    %8 = arith.extui %7 : vector<16x32xi1> to vector<16x32xi32>
    %9 = arith.sitofp %8 : vector<16x32xi32> to vector<16x32xf32>
    %cst = arith.constant dense<0.000000e+00> : vector<16x128xf32>
    %10 = tpu.matmul %9, %4, %cst {dimension_numbers = #tpu.dot_dimension_numbers<[1], [0], [0], [1], [0, 0, 1, 1], [], []>} : vector<16x32xf32>, vector<32x128xf32>, vector<16x128xf32> -> vector<16x128xf32>
    %c0_4 = arith.constant 0 : index
    %c0_5 = arith.constant 0 : index
    %11 = vector.load %arg4[%c0_4, %c0_5] : memref<16x128xf32, #tpu.memory_space<vmem>>, vector<16x128xf32>
    tpu.vector_store %arg4[%c0_4, %c0_5], %10 {strides = array<i32>} : memref<16x128xf32, #tpu.memory_space<vmem>>, vector<16x128xf32>,
    %c0_6 = arith.constant 0 : index
    %c0_7 = arith.constant 0 : index
    %12 = vector.load %arg6[%c0_6, %c0_7] : memref<1x128xf32, #tpu.memory_space<vmem>>, vector<1x128xf32>
    %cst_8 = arith.constant dense<0.000000e+00> : vector<128xf32>
    %13 = vector.multi_reduction <add>, %10, %cst_8 [0] : vector<16x128xf32> to vector<128xf32>
    %14 = vector.shape_cast %13 : vector<128xf32> to vector<1x128xf32>
    %15 = arith.addf %12, %14 : vector<1x128xf32>
    %c0_9 = arith.constant 0 : index
    %c0_10 = arith.constant 0 : index
    %16 = vector.load %arg6[%c0_9, %c0_10] : memref<1x128xf32, #tpu.memory_space<vmem>>, vector<1x128xf32>
    tpu.vector_store %arg6[%c0_9, %c0_10], %15 {strides = array<i32>} : memref<1x128xf32, #tpu.memory_space<vmem>>, vector<1x128xf32>,
    %c0_i32_11 = arith.constant 0 : i32
    %17 = arith.cmpi eq, %arg1, %c0_i32_11 : i32
    %18 = arith.extui %17 : i1 to i32
    %c0_i32_12 = arith.constant 0 : i32
    %19 = arith.cmpi ne, %18, %c0_i32_12 : i32
    scf.if %19 {
      %c0_13 = arith.constant 0 : index
      %c0_14 = arith.constant 0 : index
      %20 = vector.load %arg6[%c0_13, %c0_14] : memref<1x128xf32, #tpu.memory_space<vmem>>, vector<1x128xf32>
      %c0_15 = arith.constant 0 : index
      %c0_16 = arith.constant 0 : index
      %c0_17 = arith.constant 0 : index
      %21 = vector.load %arg5[%c0_15, %c0_16, %c0_17] : memref<1x1x128xf32, #tpu.memory_space<vmem>>, vector<1x1x128xf32>
      %22 = vector.shape_cast %21 : vector<1x1x128xf32> to vector<1x128xf32>
      %23 = vector.shape_cast %20 : vector<1x128xf32> to vector<1x1x128xf32>
      tpu.vector_store %arg5[%c0_15, %c0_16, %c0_17], %23 {strides = array<i32>} : memref<1x1x128xf32, #tpu.memory_space<vmem>>, vector<1x1x128xf32>,
    } else {
    }
    return
  }
  func.func @transform_0(%arg0: i32, %arg1: i32) -> (i32, i32) {
    %c1_i32 = arith.constant 1 : i32
    %0 = arith.muli %arg0, %c1_i32 : i32
    %1 = arith.addi %0, %arg1 : i32
    %c0_i32 = arith.constant 0 : i32
    %c0_i32_0 = arith.constant 0 : i32
    return %1, %c0_i32 : i32, i32
  }
  func.func @transform_1(%arg0: i32, %arg1: i32) -> (i32, i32) {
    %c0_i32 = arith.constant 0 : i32
    %c0_i32_0 = arith.constant 0 : i32
    %c0_i32_1 = arith.constant 0 : i32
    return %c0_i32, %c0_i32_0 : i32, i32
  }
  func.func @transform_2(%arg0: i32, %arg1: i32) -> (i32, i32) {
    %c1_i32 = arith.constant 1 : i32
    %0 = arith.muli %arg0, %c1_i32 : i32
    %1 = arith.addi %0, %arg1 : i32
    %c0_i32 = arith.constant 0 : i32
    %c0_i32_0 = arith.constant 0 : i32
    return %1, %c0_i32 : i32, i32
  }
  func.func @transform_3(%arg0: i32, %arg1: i32) -> (i32, i32, i32) {
    %c0_i32 = arith.constant 0 : i32
    %c0_i32_0 = arith.constant 0 : i32
    %c0_i32_1 = arith.constant 0 : i32
    return %arg0, %c0_i32, %c0_i32_0 : i32, i32, i32
  }
}

</mosaic_0001>

<llo_original>
// kernel: tpu_custom_call.1
$region0: #{tpu_custom_call.1}
  #allocation0 [shape = 'u32[]', space=smem, size = 0x4, offset = 0x4, fixed_abs, tag = 'smem constant byte address 0x4 - core index']
  #allocation1 [shape = 'u32[144,128]{1,0:T(1,128)}', space=vmem, size = 0x12000, scoped, tag = 'internal scratch']
  #allocation2 [shape = 'f32[1,128]{1,0:T(1,128)}', space=vmem, size = 0x200, scoped, tag = 'scratch operand']
  %s0 = inlined_call_operand.vmem [shape: s32[16,1], index: 0, kind: input, shape index: {}]
  %s1 = inlined_call_operand.hbm [shape: f32[32,128], index: 1, kind: input, shape index: {}]
  %s2 = inlined_call_operand.hbm [shape: f32[16,128], index: 2, kind: output, shape index: {0}]
  %s3 = inlined_call_operand.hbm [shape: f32[1,1,128], index: 3, kind: output, shape index: {1}]
  %4 = xla_tuple %s2, %s3
  %s5 = sld [smem:[#allocation0]]
  $region38: #{tpu_custom_call.1} parent=0
    _
  %s7 = ssub.s32 1, %s5
  %s8 = scalar_select 0, %s7, %s5
  $region1: #{tpu_custom_call.1} parent=0
    #allocation3 [shape = 'u8[16384]{0}', space=vmem, size = 0x4000, scoped, tag = 'input window, operand 1, single buffered']
    #allocation4 [shape = 's32[1]{0}', space=sflag, size = 0x4, scoped, tag = 'scoped memory for tpu_custom_call.1']
    #allocation5 [shape = 's32[1]{0}', space=sflag, size = 0x4, scoped, tag = 'scoped memory for tpu_custom_call.1']
    #allocation6 [shape = 'u8[8192]{0}', space=vmem, size = 0x2000, scoped, tag = 'output window, operand 0, single buffered']
    #allocation7 [shape = 'u8[512]{0}', space=vmem, size = 0x400, scoped, tag = 'output window, operand 1, single buffered']
    #allocation8 [shape = 's32[1]{0}', space=sflag, size = 0x4, scoped, tag = 'scoped memory for tpu_custom_call.1']
    %9 = vsyncpa [#allocation4], 0
    %10 = vsyncpa [#allocation5], 0
    %11 = vsyncpa [#allocation8], 0
    // Predicated region
    $region2: #{tpu_custom_call.1} parent=1 // pred_check
      _
    $region3: #{tpu_custom_call.1} parent=1 // pred_check_branch
      %13 = sbr.rel (0) target = $region5
    $region4: #{tpu_custom_call.1} parent=1 // pred_region
      %s14 = sadd.s32 0, 0
      %s15 = smul.u32 2, %s14
      %p16 = scmp.lt.s32.totalorder %s15, 1
      %s17 = scalar_select %p16, %s15, 1
      %s18 = smul.addr %s17, 8
      %s19 = scalar_lea.vmem %s0, %s18
      %s20 = sadd.s32 0, 0
      %s21 = smul.u32 2, %s20
    $region5: #{tpu_custom_call.1} parent=1 // pred_fallthru
      _
    // Predicated region
    $region6: #{tpu_custom_call.1} parent=1 // pred_check
      _
    $region7: #{tpu_custom_call.1} parent=1 // pred_check_branch
      %23 = sbr.rel (0) target = $region9
    $region8: #{tpu_custom_call.1} parent=1 // pred_region
      %s25 = ssub.s32 512, 512
      %26 = vsyncadd [#allocation4], %s25
      %s27 = sshll.u32 [#allocation3], 4
      %s28 = int_to_ptr.vmem [resolvable:$true] %s27
      %33 = dma.hbm_to_vmem [thread:$0]  %s1, 512, %s28, [#allocation4], 128, 128, 8
    $region9: #{tpu_custom_call.1} parent=1 // pred_fallthru
      _
    // Predicated region
    $region10: #{tpu_custom_call.1} parent=1 // pred_check
      _
    $region11: #{tpu_custom_call.1} parent=1 // pred_check_branch
      %35 = sbr.rel (0) target = $region13
    $region12: #{tpu_custom_call.1} parent=1 // pred_region
      %36 = dma.done [#allocation4], 512
    $region13: #{tpu_custom_call.1} parent=1 // pred_fallthru
      _
    %s37 = sadd.s32 0, 0
    %s38 = smul.u32 2, %s37
    %p39 = scmp.lt.s32.totalorder %s38, 1
    %s40 = scalar_select %p39, %s38, 1
    %s41 = smul.addr %s40, 8
    %s42 = scalar_lea.vmem %s0, %s41
    %s43 = sadd.s32 0, 0
    %s44 = smul.u32 2, %s43
    %p45 = scmp.lt.s32.totalorder %s44, 1
    %s46 = scalar_select %p45, %s44, 1
    %s47 = smul.addr %s46, 8
    %s48 = scalar_lea.vmem %s0, %s47
    %s49 = sadd.s32 0, 0
    %s50 = smul.u32 2, %s49
    %s51 = sadd.s32 0, 0
    %s52 = smul.u32 2, %s51
    %p53 = scmp.eq.s32.totalorder 0, 0
    // Predicated region
    $region14: #{tpu_custom_call.1} parent=1 // pred_check
      %p54 = pneg %p53
    $region15: #{tpu_custom_call.1} parent=1 // pred_check_branch
      %56 = sbr.rel (%p54) target = $region17
    $region16: #{tpu_custom_call.1} parent=1 // pred_region
      %57 = vst [vmem:[#allocation2] sm:$0x1] 0.0
    $region17: #{tpu_custom_call.1} parent=1 // pred_fallthru
      _
    %v58 = vld [vmem:[%s48] sm:$0xff]
    %v59 = vld [vmem:[%s48 + $0x8] sm:$0xff]
    %v60 = vld [vmem:[#allocation3] sm:$0xff]
    %v61 = vld [vmem:[#allocation3 + $0x8] sm:$0xff]
    %v62 = vld [vmem:[#allocation3 + $0x10] sm:$0xff]
    %v63 = vld [vmem:[#allocation3 + $0x18] sm:$0xff]
    %v64 = vlaneseq
    %v65 = vand.u32 %v64, 127
    %66 = vset.pattern.permute.xlu0 0
    %67 = vperm.xlu0 %66, %v58
    %v68 = vpop.permute.xlu0 %67
    %69 = vset.pattern.permute.xlu0 0
    %70 = vperm.xlu0 %69, %v59
    %v71 = vpop.permute.xlu0 %70
    %vm72 = vcmp.eq.s32.totalorder %v65, %v68
    %vm73 = vcmp.eq.s32.totalorder %v65, %v71
    %v74 = vsel %vm72, 1, 0
    %v75 = vsel %vm73, 1, 0
    %v76 = vcvt.s32.f32 %v74
    %v77 = vcvt.s32.f32 %v75
    %vm78 = vcmask 261120
    %v80 = vsel %vm78, %v76, 0
    %v83 = vsel %vm78, %v77, 0
    %85 = vmatprep.subr.mxu0 0.0
    %86 = vmatpush1.msra.mxu0 0.0
    %87 = vmatprep.subr.mxu0 0.0
    %88 = vmatpush1.msra.mxu0 0.0
    %89 = vmatprep.subr.mxu0 0.0
    %90 = vmatpush1.msra.mxu0 0.0
    %91 = vmatprep.subr.mxu0 0.0
    %92 = vmatpush1.msra.mxu0 0.0
    %93 = vmatprep.subr.mxu0 0.0
    %94 = vmatpush1.msra.mxu0 0.0
    %95 = vmatprep.subr.mxu0 0.0
    %96 = vmatpush1.msra.mxu0 0.0
    %97 = vmatprep.subr.mxu0 0.0
    %98 = vmatpush1.msra.mxu0 0.0
    %99 = vmatprep.subr.mxu0 0.0
    %100 = vmatpush1.msra.mxu0 0.0
    %101 = vmatprep.subr.mxu0 0.0
    %102 = vmatpush1.msra.mxu0 0.0
    %103 = vmatprep.subr.mxu0 0.0
    %104 = vmatpush1.msra.mxu0 0.0
    %105 = vmatprep.subr.mxu0 0.0
    %106 = vmatpush1.msra.mxu0 0.0
    %107 = vmatprep.subr.mxu0 0.0
    %108 = vmatpush1.msra.mxu0 0.0
    %109 = vmatprep.subr.mxu0 0.0
    %110 = vmatpush1.msra.mxu0 %v63
    %111 = vmatprep.subr.mxu0 0.0
    %112 = vmatpush1.msra.mxu0 %v62
    %113 = vmatprep.subr.mxu0 0.0
    %114 = vmatpush1.msra.mxu0 %v61
    %115 = vmatprep.subr.mxu0 0.0
    %116 = vmatpush1.msra.mxu0 %v60
    %117 = vmatprep.subr.mxu0 0.0
    %118 = vmatpush2.msra.mxu0 0.0
    %119 = vmatprep.subr.mxu0 0.0
    %120 = vmatpush2.msra.mxu0 0.0
    %121 = vmatprep.subr.mxu0 0.0
    %122 = vmatpush2.msra.mxu0 0.0
    %123 = vmatprep.subr.mxu0 0.0
    %124 = vmatpush2.msra.mxu0 0.0
    %125 = vmatprep.subr.mxu0 0.0
    %126 = vmatpush2.msra.mxu0 0.0
    %127 = vmatprep.subr.mxu0 0.0
    %128 = vmatpush2.msra.mxu0 0.0
    %129 = vmatprep.subr.mxu0 0.0
    %130 = vmatpush2.msra.mxu0 0.0
    %131 = vmatprep.subr.mxu0 0.0
    %132 = vmatpush2.msra.mxu0 0.0
    %133 = vmatprep.subr.mxu0 0.0
    %134 = vmatpush2.msra.mxu0 0.0
    %135 = vmatprep.subr.mxu0 0.0
    %136 = vmatpush2.msra.mxu0 0.0
    %137 = vmatprep.subr.mxu0 0.0
    %138 = vmatpush2.msra.mxu0 0.0
    %139 = vmatprep.subr.mxu0 0.0
    %140 = vmatpush2.msra.mxu0 0.0
    %141 = vmatprep.subr.mxu0 0.0
    %142 = vmatpush2.msra.mxu0 0.0
    %143 = vmatprep.subr.mxu0 0.0
    %144 = vmatpush2.msra.mxu0 0.0
    %145 = vmatprep.subr.mxu0 0.0
    %146 = vmatpush2.msra.mxu0 0.0
    %147 = vmatprep.subr.mxu0 0.0
    %148 = vmatpush2.msra.mxu0 0.0
    %149 = vmatprep.mubr.f32.mxu0 0.0
    %150 = vmatmul.mubr.f32.gmra.mxu0 %v80
    %v151 = vpop.f32.mrf.mxu0
    %v152 = vadd.f32 0.0, %v151
    %v153 = vpop.f32.mrf.mxu0
    %154 = vmatprep.mubr.f32.mxu0 0.0
    %155 = vmatmul.mubr.f32.gmra.mxu0 %v83
    %v156 = vpop.f32.mrf.mxu0
    %v157 = vadd.f32 0.0, %v156
    %v158 = vpop.f32.mrf.mxu0
    %159 = vdwg.mxu0
    %160 = vst [vmem:[#allocation6] sm:$0xff] %v152
    %161 = vst [vmem:[#allocation6 + $0x8] sm:$0xff] %v157
    %v162 = vld [vmem:[#allocation2] sm:$0x1]
    %v163 = vadd.f32 %v152, %v157
    %v164 = vrot.slane %v163, 4
    %v165 = vadd.f32 %v163, %v164
    %v166 = vrot.slane %v165, 2
    %v167 = vadd.f32 %v165, %v166
    %v168 = vrot.slane %v167, 1
    %v169 = vadd.f32 %v167, %v168
    %v170 = vadd.f32 %v162, %v169
    %171 = vst [vmem:[#allocation2] sm:$0x1] %v170
    // Predicated region
    $region18: #{tpu_custom_call.1} parent=1 // pred_check
      %p172 = pneg %p53
    $region19: #{tpu_custom_call.1} parent=1 // pred_check_branch
      %174 = sbr.rel (%p172) target = $region21
    $region20: #{tpu_custom_call.1} parent=1 // pred_region
      %v175 = vld [vmem:[#allocation2] sm:$0x1]
      %176 = vst [vmem:[#allocation7] sm:$0x1] %v175
    $region21: #{tpu_custom_call.1} parent=1 // pred_fallthru
      _
    // Predicated region
    $region22: #{tpu_custom_call.1} parent=1 // pred_check
      _
    $region23: #{tpu_custom_call.1} parent=1 // pred_check_branch
      %178 = sbr.rel (0) target = $region25
    $region24: #{tpu_custom_call.1} parent=1 // pred_region
      %s179 = sadd.s32 0, 0
      %s180 = smul.u32 2, %s179
      %s182 = ssub.s32 256, 256
      %183 = vsyncadd [#allocation5], %s182
      %s184 = smul.addr %s180, 128
      %s185 = scalar_lea.hbm %s2, %s184
      %s186 = sshll.u32 [#allocation6], 4
      %s187 = int_to_ptr.vmem [resolvable:$true] %s186
      %192 = dma.vmem_to_hbm [thread:$0]  %s187, 256, %s185, [#allocation5], 128, 128, 8
    $region25: #{tpu_custom_call.1} parent=1 // pred_fallthru
      _
    // Predicated region
    $region26: #{tpu_custom_call.1} parent=1 // pred_check
      _
    $region27: #{tpu_custom_call.1} parent=1 // pred_check_branch
      %194 = sbr.rel (0) target = $region29
    $region28: #{tpu_custom_call.1} parent=1 // pred_region
      %s196 = ssub.s32 16, 16
      %197 = vsyncadd [#allocation8], %s196
      %s199 = sshll.u32 [#allocation7], 4
      %s200 = int_to_ptr.vmem [resolvable:$true] %s199
      %202 = dma.vmem_to_hbm [thread:$0]  %s200, 16, %s3, [#allocation8]
    $region29: #{tpu_custom_call.1} parent=1 // pred_fallthru
      _
    // Predicated region
    $region30: #{tpu_custom_call.1} parent=1 // pred_check
      _
    $region31: #{tpu_custom_call.1} parent=1 // pred_check_branch
      %204 = sbr.rel (0) target = $region33
    $region32: #{tpu_custom_call.1} parent=1 // pred_region
      %205 = dma.done [#allocation5], 256
    $region33: #{tpu_custom_call.1} parent=1 // pred_fallthru
      _
    // Predicated region
    $region34: #{tpu_custom_call.1} parent=1 // pred_check
      _
    $region35: #{tpu_custom_call.1} parent=1 // pred_check_branch
      %207 = sbr.rel (0) target = $region37
    $region36: #{tpu_custom_call.1} parent=1 // pred_region
      %208 = dma.done [#allocation8], 16
    $region37: #{tpu_custom_call.1} parent=1 // pred_fallthru
      _
    %209 = vsyncpa [#allocation4], 1
    %210 = vsyncpa [#allocation5], 1
    %211 = vsyncpa [#allocation8], 1

</llo_original>
